<compile_context>
chip_gen: v5e
topology: v5e:2x2
jax: 0.10.0
libtpu: 0.0.40
codegen_flags: <defaults>
</compile_context>

<pallas_src>
import jax
import jax.numpy as jnp
from jax.experimental import pallas as pl
from jax.experimental.pallas import tpu as pltpu


def _cfg_denoiser_kernel(w_ref, ctx_ref, x_ref, out_ref):
    # w_ref:   SMEM [B*C*C] f32 -- c_in-scaled weight, flattened [b, c_out, c_in]
    # ctx_ref: SMEM [B*C]   f32 -- CFG-blended context,  flattened [b, c_out]
    # x_ref:   VMEM [1, C, rows_tile, 128] f32 (dense lane/sublane tile)
    # out_ref: VMEM [1, C, rows_tile, 128] f32
    b = pl.program_id(0)
    C = x_ref.shape[1]
    w_base = b * (C * C)
    ctx_base = b * C
    for c_out in range(C):                       # fully unrolled: C*C VPU FMAs
        acc = x_ref[0, 0] * w_ref[w_base + c_out * C] + ctx_ref[ctx_base + c_out]
        for c_in in range(1, C):
            acc = acc + x_ref[0, c_in] * w_ref[w_base + c_out * C + c_in]
        out_ref[0, c_out] = acc.astype(out_ref.dtype)


def _pick_rows_tile(rows, max_rows):
    """Largest row tile: whole extent if it fits the budget, else the biggest
    multiple-of-8 divisor of `rows` within budget (keeps (8,128)-dense tiles)."""
    if rows <= max_rows:
        return rows
    cand = (min(max_rows, rows) // 8) * 8
    while cand >= 8:
        if rows % cand == 0:
            return cand
        cand -= 8
    return rows  # no clean divisor: single big tile; vmem_limit handled below


def cfg_denoiser(x_nchw, sigma, uncond, cond, cond_scale, w1, wctx,
                 *, tile_budget_bytes=2 << 20):
    """x_nchw: [B,C,H,W] f32; sigma: [B] f32; uncond/cond: [B,S,D] f32;
    cond_scale: scalar; w1: [C,C]; wctx: [D,C]. Returns [B,C,H,W]."""
    B, C, H, W = x_nchw.shape
    HW = H * W

    # --- tiny per-batch operands, computed once in the wrapper -----------------
    # k-diffusion input scaling folded into the 16-value weight:
    #   out[b, k] = sum_c (c_in[b] * w1[c, k]) * x[b, c, ...] + ctx_blend[b, k]
    c_in = 1.0 / jnp.sqrt(sigma * sigma + 1.0)                        # [B]
    w_scaled = c_in[:, None, None] * jnp.transpose(w1)[None, :, :]    # [B, C, C]
    ctx_u = jnp.mean(uncond, axis=1) @ wctx                           # [B, C]
    ctx_c = jnp.mean(cond, axis=1) @ wctx                             # [B, C]
    ctx_blend = ctx_u + (ctx_c - ctx_u) * cond_scale                  # [B, C]
    w_flat = w_scaled.reshape(B * C * C).astype(jnp.float32)          # SMEM scalars
    ctx_flat = ctx_blend.reshape(B * C).astype(jnp.float32)           # SMEM scalars

    # --- dense [B, C, rows, 128] activation layout -----------------------------
    x_flat = x_nchw.reshape(B, C, HW)                                 # free reshape
    pad = (-HW) % 128
    if pad:
        x_flat = jnp.pad(x_flat, ((0, 0), (0, 0), (0, pad)))
    HW_p = HW + pad
    rows = HW_p // 128
    x4 = x_flat.reshape(B, C, rows, 128)

    # Row tiling by bytes budget (no tiling at all for typical SD latents).
    bytes_per_row = C * 128 * 4
    max_rows = max(8, tile_budget_bytes // bytes_per_row)
    rows_tile = _pick_rows_tile(rows, max_rows)
    # v7x: keep both TensorCores busy when B == 1 by splitting rows in two.
    if B == 1 and rows_tile == rows and rows % 16 == 0:
        rows_tile = rows // 2
    n_tiles = rows // rows_tile

    # Scoped-VMEM guard (matters on v5e's 16 MiB default for oversized fallbacks).
    tile_bytes = C * rows_tile * 128 * 4
    buffered_bytes = 2 * 2 * tile_bytes        # (x + out) x double buffering
    compiler_kwargs = dict(dimension_semantics=("parallel", "parallel"))
    if buffered_bytes > 12 * 1024 * 1024:
        compiler_kwargs["vmem_limit_bytes"] = buffered_bytes + (4 << 20)

    grid_spec = pltpu.PrefetchScalarGridSpec(
        num_scalar_prefetch=0,
        grid=(B, n_tiles),
        in_specs=[
            pl.BlockSpec(memory_space=pltpu.MemorySpace.SMEM),        # w_flat
            pl.BlockSpec(memory_space=pltpu.MemorySpace.SMEM),        # ctx_flat
            pl.BlockSpec((1, C, rows_tile, 128), lambda b, t: (b, 0, t, 0)),  # x
        ],
        out_specs=pl.BlockSpec((1, C, rows_tile, 128), lambda b, t: (b, 0, t, 0)),
    )

    out4 = pl.pallas_call(
        _cfg_denoiser_kernel,
        out_shape=jax.ShapeDtypeStruct((B, C, rows, 128), x4.dtype),
        grid_spec=grid_spec,
        compiler_params=pltpu.CompilerParams(**compiler_kwargs),
    )(w_flat, ctx_flat, x4)

    out_flat = out4.reshape(B, C, HW_p)
    if pad:
        out_flat = out_flat[:, :, :HW]
    return out_flat.reshape(B, C, H, W)


def _reference(x_nchw, sigma, uncond, cond, cond_scale, w1, wctx):
    """Pure-JAX reference mirroring the literal cat/chunk PyTorch forward."""
    B = x_nchw.shape[0]
    x_in = jnp.concatenate([x_nchw] * 2, axis=0)
    sigma_in = jnp.concatenate([sigma] * 2, axis=0)
    cond_in = jnp.concatenate([uncond, cond], axis=0)

    c_in = 1.0 / jnp.sqrt(sigma_in ** 2 + 1.0)
    xs = x_in * c_in[:, None, None, None]
    h = jnp.einsum("bchw,ck->bkhw", xs, w1)              # 1x1 conv over channels
    ctx = jnp.mean(cond_in, axis=1) @ wctx               # [2B, C]
    y = h + ctx[:, :, None, None]
    u, c = y[:B], y[B:]
    return u + (c - u) * cond_scale


if __name__ == "__main__":
    B, C, H, W = 2, 4, 16, 16
    S, D = 8, 32
    cond_scale = 7.5

    key = jax.random.PRNGKey(0)
    k1, k2, k3, k4, k5, k6 = jax.random.split(key, 6)
    x = jax.random.normal(k1, (B, C, H, W), dtype=jnp.float32)
    sigma = jax.random.uniform(k2, (B,), dtype=jnp.float32, minval=0.1, maxval=10.0)
    uncond = jax.random.normal(k3, (B, S, D), dtype=jnp.float32)
    cond = jax.random.normal(k4, (B, S, D), dtype=jnp.float32)
    # Deterministic synthetic "inner model" parameters.
    w1 = jax.random.normal(k5, (C, C), dtype=jnp.float32) * 0.2
    wctx = jax.random.normal(k6, (D, C), dtype=jnp.float32) * 0.1

    out = cfg_denoiser(x, sigma, uncond, cond, cond_scale, w1, wctx)
    out = jax.block_until_ready(out)

    ref = _reference(x, sigma, uncond, cond, cond_scale, w1, wctx)
    assert out.shape == (B, C, H, W)
    assert jnp.allclose(out, ref, atol=1e-4, rtol=1e-4), "mismatch vs reference"

    print("KERNEL_OK")
</pallas_src>

<mosaic_0001>
module attributes {stable_mosaic.version = 11 : i64} {
  func.func @_cfg_denoiser_kernel(%arg0: i32, %arg1: i32, %arg2: memref<32xf32, #tpu.memory_space<smem>>, %arg3: memref<8xf32, #tpu.memory_space<smem>>, %arg4: memref<1x4x2x128xf32, #tpu.memory_space<vmem>>, %arg5: memref<1x4x2x128xf32, #tpu.memory_space<vmem>>) attributes {dimension_semantics = [#tpu.dimension_semantics<parallel>, #tpu.dimension_semantics<parallel>], iteration_bounds = array<i64: 2, 1>, scalar_prefetch = 0 : i64, scratch_operands = 0 : i64, tpu.core_type = #tpu.core_type<tc>, window_params = [{transform_indices = @transform_0, window_bounds = array<i64: 32>}, {transform_indices = @transform_1, window_bounds = array<i64: 8>}, {transform_indices = @transform_2, window_bounds = array<i64: 1, 4, 2, 128>}, {transform_indices = @transform_3, window_bounds = array<i64: 1, 4, 2, 128>}]} {
    %c16_i32 = arith.constant 16 : i32
    %0 = arith.muli %arg0, %c16_i32 : i32
    %c4_i32 = arith.constant 4 : i32
    %1 = arith.muli %arg0, %c4_i32 : i32
    %c0 = arith.constant 0 : index
    %c0_0 = arith.constant 0 : index
    %c0_1 = arith.constant 0 : index
    %c0_2 = arith.constant 0 : index
    %2 = vector.load %arg4[%c0, %c0_0, %c0_1, %c0_2] : memref<1x4x2x128xf32, #tpu.memory_space<vmem>>, vector<1x1x2x128xf32>
    %3 = vector.shape_cast %2 : vector<1x1x2x128xf32> to vector<2x128xf32>
    %c0_i32 = arith.constant 0 : i32
    %4 = arith.addi %0, %c0_i32 : i32
    %5 = arith.index_cast %4 : i32 to index
    %6 = memref.load %arg2[%5] : memref<32xf32, #tpu.memory_space<smem>>
    %7 = vector.broadcast %6 : f32 to vector<2x128xf32>
    %8 = arith.mulf %3, %7 : vector<2x128xf32>
    %c0_i32_3 = arith.constant 0 : i32
    %9 = arith.addi %1, %c0_i32_3 : i32
    %10 = arith.index_cast %9 : i32 to index
    %11 = memref.load %arg3[%10] : memref<8xf32, #tpu.memory_space<smem>>
    %12 = vector.broadcast %11 : f32 to vector<2x128xf32>
    %13 = arith.addf %8, %12 : vector<2x128xf32>
    %c0_4 = arith.constant 0 : index
    %c1 = arith.constant 1 : index
    %c0_5 = arith.constant 0 : index
    %c0_6 = arith.constant 0 : index
    %14 = vector.load %arg4[%c0_4, %c1, %c0_5, %c0_6] : memref<1x4x2x128xf32, #tpu.memory_space<vmem>>, vector<1x1x2x128xf32>
    %15 = vector.shape_cast %14 : vector<1x1x2x128xf32> to vector<2x128xf32>
    %c0_i32_7 = arith.constant 0 : i32
    %16 = arith.addi %0, %c0_i32_7 : i32
    %c1_i32 = arith.constant 1 : i32
    %17 = arith.addi %16, %c1_i32 : i32
    %18 = arith.index_cast %17 : i32 to index
    %19 = memref.load %arg2[%18] : memref<32xf32, #tpu.memory_space<smem>>
    %20 = vector.broadcast %19 : f32 to vector<2x128xf32>
    %21 = arith.mulf %15, %20 : vector<2x128xf32>
    %22 = arith.addf %13, %21 : vector<2x128xf32>
    %c0_8 = arith.constant 0 : index
    %c2 = arith.constant 2 : index
    %c0_9 = arith.constant 0 : index
    %c0_10 = arith.constant 0 : index
    %23 = vector.load %arg4[%c0_8, %c2, %c0_9, %c0_10] : memref<1x4x2x128xf32, #tpu.memory_space<vmem>>, vector<1x1x2x128xf32>
    %24 = vector.shape_cast %23 : vector<1x1x2x128xf32> to vector<2x128xf32>
    %c0_i32_11 = arith.constant 0 : i32
    %25 = arith.addi %0, %c0_i32_11 : i32
    %c2_i32 = arith.constant 2 : i32
    %26 = arith.addi %25, %c2_i32 : i32
    %27 = arith.index_cast %26 : i32 to index
    %28 = memref.load %arg2[%27] : memref<32xf32, #tpu.memory_space<smem>>
    %29 = vector.broadcast %28 : f32 to vector<2x128xf32>
    %30 = arith.mulf %24, %29 : vector<2x128xf32>
    %31 = arith.addf %22, %30 : vector<2x128xf32>
    %c0_12 = arith.constant 0 : index
    %c3 = arith.constant 3 : index
    %c0_13 = arith.constant 0 : index
    %c0_14 = arith.constant 0 : index
    %32 = vector.load %arg4[%c0_12, %c3, %c0_13, %c0_14] : memref<1x4x2x128xf32, #tpu.memory_space<vmem>>, vector<1x1x2x128xf32>
    %33 = vector.shape_cast %32 : vector<1x1x2x128xf32> to vector<2x128xf32>
    %c0_i32_15 = arith.constant 0 : i32
    %34 = arith.addi %0, %c0_i32_15 : i32
    %c3_i32 = arith.constant 3 : i32
    %35 = arith.addi %34, %c3_i32 : i32
    %36 = arith.index_cast %35 : i32 to index
    %37 = memref.load %arg2[%36] : memref<32xf32, #tpu.memory_space<smem>>
    %38 = vector.broadcast %37 : f32 to vector<2x128xf32>
    %39 = arith.mulf %33, %38 : vector<2x128xf32>
    %40 = arith.addf %31, %39 : vector<2x128xf32>
    %c0_16 = arith.constant 0 : index
    %c0_17 = arith.constant 0 : index
    %c0_18 = arith.constant 0 : index
    %c0_19 = arith.constant 0 : index
    %41 = vector.load %arg5[%c0_16, %c0_17, %c0_18, %c0_19] : memref<1x4x2x128xf32, #tpu.memory_space<vmem>>, vector<1x1x2x128xf32>
    %42 = vector.shape_cast %41 : vector<1x1x2x128xf32> to vector<2x128xf32>
    %43 = vector.shape_cast %40 : vector<2x128xf32> to vector<1x1x2x128xf32>
    tpu.vector_store %arg5[%c0_16, %c0_17, %c0_18, %c0_19], %43 {strides = array<i32>} : memref<1x4x2x128xf32, #tpu.memory_space<vmem>>, vector<1x1x2x128xf32>,
    %c0_20 = arith.constant 0 : index
    %c0_21 = arith.constant 0 : index
    %c0_22 = arith.constant 0 : index
    %c0_23 = arith.constant 0 : index
    %44 = vector.load %arg4[%c0_20, %c0_21, %c0_22, %c0_23] : memref<1x4x2x128xf32, #tpu.memory_space<vmem>>, vector<1x1x2x128xf32>
    %45 = vector.shape_cast %44 : vector<1x1x2x128xf32> to vector<2x128xf32>
    %c4_i32_24 = arith.constant 4 : i32
    %46 = arith.addi %0, %c4_i32_24 : i32
    %47 = arith.index_cast %46 : i32 to index
    %48 = memref.load %arg2[%47] : memref<32xf32, #tpu.memory_space<smem>>
    %49 = vector.broadcast %48 : f32 to vector<2x128xf32>
    %50 = arith.mulf %45, %49 : vector<2x128xf32>
    %c1_i32_25 = arith.constant 1 : i32
    %51 = arith.addi %1, %c1_i32_25 : i32
    %52 = arith.index_cast %51 : i32 to index
    %53 = memref.load %arg3[%52] : memref<8xf32, #tpu.memory_space<smem>>
    %54 = vector.broadcast %53 : f32 to vector<2x128xf32>
    %55 = arith.addf %50, %54 : vector<2x128xf32>
    %c0_26 = arith.constant 0 : index
    %c1_27 = arith.constant 1 : index
    %c0_28 = arith.constant 0 : index
    %c0_29 = arith.constant 0 : index
    %56 = vector.load %arg4[%c0_26, %c1_27, %c0_28, %c0_29] : memref<1x4x2x128xf32, #tpu.memory_space<vmem>>, vector<1x1x2x128xf32>
    %57 = vector.shape_cast %56 : vector<1x1x2x128xf32> to vector<2x128xf32>
    %c4_i32_30 = arith.constant 4 : i32
    %58 = arith.addi %0, %c4_i32_30 : i32
    %c1_i32_31 = arith.constant 1 : i32
    %59 = arith.addi %58, %c1_i32_31 : i32
    %60 = arith.index_cast %59 : i32 to index
    %61 = memref.load %arg2[%60] : memref<32xf32, #tpu.memory_space<smem>>
    %62 = vector.broadcast %61 : f32 to vector<2x128xf32>
    %63 = arith.mulf %57, %62 : vector<2x128xf32>
    %64 = arith.addf %55, %63 : vector<2x128xf32>
    %c0_32 = arith.constant 0 : index
    %c2_33 = arith.constant 2 : index
    %c0_34 = arith.constant 0 : index
    %c0_35 = arith.constant 0 : index
    %65 = vector.load %arg4[%c0_32, %c2_33, %c0_34, %c0_35] : memref<1x4x2x128xf32, #tpu.memory_space<vmem>>, vector<1x1x2x128xf32>
    %66 = vector.shape_cast %65 : vector<1x1x2x128xf32> to vector<2x128xf32>
    %c4_i32_36 = arith.constant 4 : i32
    %67 = arith.addi %0, %c4_i32_36 : i32
    %c2_i32_37 = arith.constant 2 : i32
    %68 = arith.addi %67, %c2_i32_37 : i32
    %69 = arith.index_cast %68 : i32 to index
    %70 = memref.load %arg2[%69] : memref<32xf32, #tpu.memory_space<smem>>
    %71 = vector.broadcast %70 : f32 to vector<2x128xf32>
    %72 = arith.mulf %66, %71 : vector<2x128xf32>
    %73 = arith.addf %64, %72 : vector<2x128xf32>
    %c0_38 = arith.constant 0 : index
    %c3_39 = arith.constant 3 : index
    %c0_40 = arith.constant 0 : index
    %c0_41 = arith.constant 0 : index
    %74 = vector.load %arg4[%c0_38, %c3_39, %c0_40, %c0_41] : memref<1x4x2x128xf32, #tpu.memory_space<vmem>>, vector<1x1x2x128xf32>
    %75 = vector.shape_cast %74 : vector<1x1x2x128xf32> to vector<2x128xf32>
    %c4_i32_42 = arith.constant 4 : i32
    %76 = arith.addi %0, %c4_i32_42 : i32
    %c3_i32_43 = arith.constant 3 : i32
    %77 = arith.addi %76, %c3_i32_43 : i32
    %78 = arith.index_cast %77 : i32 to index
    %79 = memref.load %arg2[%78] : memref<32xf32, #tpu.memory_space<smem>>
    %80 = vector.broadcast %79 : f32 to vector<2x128xf32>
    %81 = arith.mulf %75, %80 : vector<2x128xf32>
    %82 = arith.addf %73, %81 : vector<2x128xf32>
    %c0_44 = arith.constant 0 : index
    %c1_45 = arith.constant 1 : index
    %c0_46 = arith.constant 0 : index
    %c0_47 = arith.constant 0 : index
    %83 = vector.load %arg5[%c0_44, %c1_45, %c0_46, %c0_47] : memref<1x4x2x128xf32, #tpu.memory_space<vmem>>, vector<1x1x2x128xf32>
    %84 = vector.shape_cast %83 : vector<1x1x2x128xf32> to vector<2x128xf32>
    %85 = vector.shape_cast %82 : vector<2x128xf32> to vector<1x1x2x128xf32>
    tpu.vector_store %arg5[%c0_44, %c1_45, %c0_46, %c0_47], %85 {strides = array<i32>} : memref<1x4x2x128xf32, #tpu.memory_space<vmem>>, vector<1x1x2x128xf32>,
    %c0_48 = arith.constant 0 : index
    %c0_49 = arith.constant 0 : index
    %c0_50 = arith.constant 0 : index
    %c0_51 = arith.constant 0 : index
    %86 = vector.load %arg4[%c0_48, %c0_49, %c0_50, %c0_51] : memref<1x4x2x128xf32, #tpu.memory_space<vmem>>, vector<1x1x2x128xf32>
    %87 = vector.shape_cast %86 : vector<1x1x2x128xf32> to vector<2x128xf32>
    %c8_i32 = arith.constant 8 : i32
    %88 = arith.addi %0, %c8_i32 : i32
    %89 = arith.index_cast %88 : i32 to index
    %90 = memref.load %arg2[%89] : memref<32xf32, #tpu.memory_space<smem>>
    %91 = vector.broadcast %90 : f32 to vector<2x128xf32>
    %92 = arith.mulf %87, %91 : vector<2x128xf32>
    %c2_i32_52 = arith.constant 2 : i32
    %93 = arith.addi %1, %c2_i32_52 : i32
    %94 = arith.index_cast %93 : i32 to index
    %95 = memref.load %arg3[%94] : memref<8xf32, #tpu.memory_space<smem>>
    %96 = vector.broadcast %95 : f32 to vector<2x128xf32>
    %97 = arith.addf %92, %96 : vector<2x128xf32>
    %c0_53 = arith.constant 0 : index
    %c1_54 = arith.constant 1 : index
    %c0_55 = arith.constant 0 : index
    %c0_56 = arith.constant 0 : index
    %98 = vector.load %arg4[%c0_53, %c1_54, %c0_55, %c0_56] : memref<1x4x2x128xf32, #tpu.memory_space<vmem>>, vector<1x1x2x128xf32>
    %99 = vector.shape_cast %98 : vector<1x1x2x128xf32> to vector<2x128xf32>
    %c8_i32_57 = arith.constant 8 : i32
    %100 = arith.addi %0, %c8_i32_57 : i32
    %c1_i32_58 = arith.constant 1 : i32
    %101 = arith.addi %100, %c1_i32_58 : i32
    %102 = arith.index_cast %101 : i32 to index
    %103 = memref.load %arg2[%102] : memref<32xf32, #tpu.memory_space<smem>>
    %104 = vector.broadcast %103 : f32 to vector<2x128xf32>
    %105 = arith.mulf %99, %104 : vector<2x128xf32>
    %106 = arith.addf %97, %105 : vector<2x128xf32>
    %c0_59 = arith.constant 0 : index
    %c2_60 = arith.constant 2 : index
    %c0_61 = arith.constant 0 : index
    %c0_62 = arith.constant 0 : index
    %107 = vector.load %arg4[%c0_59, %c2_60, %c0_61, %c0_62] : memref<1x4x2x128xf32, #tpu.memory_space<vmem>>, vector<1x1x2x128xf32>
    %108 = vector.shape_cast %107 : vector<1x1x2x128xf32> to vector<2x128xf32>
    %c8_i32_63 = arith.constant 8 : i32
    %109 = arith.addi %0, %c8_i32_63 : i32
    %c2_i32_64 = arith.constant 2 : i32
    %110 = arith.addi %109, %c2_i32_64 : i32
    %111 = arith.index_cast %110 : i32 to index
    %112 = memref.load %arg2[%111] : memref<32xf32, #tpu.memory_space<smem>>
    %113 = vector.broadcast %112 : f32 to vector<2x128xf32>
    %114 = arith.mulf %108, %113 : vector<2x128xf32>
    %115 = arith.addf %106, %114 : vector<2x128xf32>
    %c0_65 = arith.constant 0 : index
    %c3_66 = arith.constant 3 : index
    %c0_67 = arith.constant 0 : index
    %c0_68 = arith.constant 0 : index
    %116 = vector.load %arg4[%c0_65, %c3_66, %c0_67, %c0_68] : memref<1x4x2x128xf32, #tpu.memory_space<vmem>>, vector<1x1x2x128xf32>
    %117 = vector.shape_cast %116 : vector<1x1x2x128xf32> to vector<2x128xf32>
    %c8_i32_69 = arith.constant 8 : i32
    %118 = arith.addi %0, %c8_i32_69 : i32
    %c3_i32_70 = arith.constant 3 : i32
    %119 = arith.addi %118, %c3_i32_70 : i32
    %120 = arith.index_cast %119 : i32 to index
    %121 = memref.load %arg2[%120] : memref<32xf32, #tpu.memory_space<smem>>
    %122 = vector.broadcast %121 : f32 to vector<2x128xf32>
    %123 = arith.mulf %117, %122 : vector<2x128xf32>
    %124 = arith.addf %115, %123 : vector<2x128xf32>
    %c0_71 = arith.constant 0 : index
    %c2_72 = arith.constant 2 : index
    %c0_73 = arith.constant 0 : index
    %c0_74 = arith.constant 0 : index
    %125 = vector.load %arg5[%c0_71, %c2_72, %c0_73, %c0_74] : memref<1x4x2x128xf32, #tpu.memory_space<vmem>>, vector<1x1x2x128xf32>
    %126 = vector.shape_cast %125 : vector<1x1x2x128xf32> to vector<2x128xf32>
    %127 = vector.shape_cast %124 : vector<2x128xf32> to vector<1x1x2x128xf32>
    tpu.vector_store %arg5[%c0_71, %c2_72, %c0_73, %c0_74], %127 {strides = array<i32>} : memref<1x4x2x128xf32, #tpu.memory_space<vmem>>, vector<1x1x2x128xf32>,
    %c0_75 = arith.constant 0 : index
    %c0_76 = arith.constant 0 : index
    %c0_77 = arith.constant 0 : index
    %c0_78 = arith.constant 0 : index
    %128 = vector.load %arg4[%c0_75, %c0_76, %c0_77, %c0_78] : memref<1x4x2x128xf32, #tpu.memory_space<vmem>>, vector<1x1x2x128xf32>
    %129 = vector.shape_cast %128 : vector<1x1x2x128xf32> to vector<2x128xf32>
    %c12_i32 = arith.constant 12 : i32
    %130 = arith.addi %0, %c12_i32 : i32
    %131 = arith.index_cast %130 : i32 to index
    %132 = memref.load %arg2[%131] : memref<32xf32, #tpu.memory_space<smem>>
    %133 = vector.broadcast %132 : f32 to vector<2x128xf32>
    %134 = arith.mulf %129, %133 : vector<2x128xf32>
    %c3_i32_79 = arith.constant 3 : i32
    %135 = arith.addi %1, %c3_i32_79 : i32
    %136 = arith.index_cast %135 : i32 to index
    %137 = memref.load %arg3[%136] : memref<8xf32, #tpu.memory_space<smem>>
    %138 = vector.broadcast %137 : f32 to vector<2x128xf32>
    %139 = arith.addf %134, %138 : vector<2x128xf32>
    %c0_80 = arith.constant 0 : index
    %c1_81 = arith.constant 1 : index
    %c0_82 = arith.constant 0 : index
    %c0_83 = arith.constant 0 : index
    %140 = vector.load %arg4[%c0_80, %c1_81, %c0_82, %c0_83] : memref<1x4x2x128xf32, #tpu.memory_space<vmem>>, vector<1x1x2x128xf32>
    %141 = vector.shape_cast %140 : vector<1x1x2x128xf32> to vector<2x128xf32>
    %c12_i32_84 = arith.constant 12 : i32
    %142 = arith.addi %0, %c12_i32_84 : i32
    %c1_i32_85 = arith.constant 1 : i32
    %143 = arith.addi %142, %c1_i32_85 : i32
    %144 = arith.index_cast %143 : i32 to index
    %145 = memref.load %arg2[%144] : memref<32xf32, #tpu.memory_space<smem>>
    %146 = vector.broadcast %145 : f32 to vector<2x128xf32>
    %147 = arith.mulf %141, %146 : vector<2x128xf32>
    %148 = arith.addf %139, %147 : vector<2x128xf32>
    %c0_86 = arith.constant 0 : index
    %c2_87 = arith.constant 2 : index
    %c0_88 = arith.constant 0 : index
    %c0_89 = arith.constant 0 : index
    %149 = vector.load %arg4[%c0_86, %c2_87, %c0_88, %c0_89] : memref<1x4x2x128xf32, #tpu.memory_space<vmem>>, vector<1x1x2x128xf32>
    %150 = vector.shape_cast %149 : vector<1x1x2x128xf32> to vector<2x128xf32>
    %c12_i32_90 = arith.constant 12 : i32
    %151 = arith.addi %0, %c12_i32_90 : i32
    %c2_i32_91 = arith.constant 2 : i32
    %152 = arith.addi %151, %c2_i32_91 : i32
    %153 = arith.index_cast %152 : i32 to index
    %154 = memref.load %arg2[%153] : memref<32xf32, #tpu.memory_space<smem>>
    %155 = vector.broadcast %154 : f32 to vector<2x128xf32>
    %156 = arith.mulf %150, %155 : vector<2x128xf32>
    %157 = arith.addf %148, %156 : vector<2x128xf32>
    %c0_92 = arith.constant 0 : index
    %c3_93 = arith.constant 3 : index
    %c0_94 = arith.constant 0 : index
    %c0_95 = arith.constant 0 : index
    %158 = vector.load %arg4[%c0_92, %c3_93, %c0_94, %c0_95] : memref<1x4x2x128xf32, #tpu.memory_space<vmem>>, vector<1x1x2x128xf32>
    %159 = vector.shape_cast %158 : vector<1x1x2x128xf32> to vector<2x128xf32>
    %c12_i32_96 = arith.constant 12 : i32
    %160 = arith.addi %0, %c12_i32_96 : i32
    %c3_i32_97 = arith.constant 3 : i32
    %161 = arith.addi %160, %c3_i32_97 : i32
    %162 = arith.index_cast %161 : i32 to index
    %163 = memref.load %arg2[%162] : memref<32xf32, #tpu.memory_space<smem>>
    %164 = vector.broadcast %163 : f32 to vector<2x128xf32>
    %165 = arith.mulf %159, %164 : vector<2x128xf32>
    %166 = arith.addf %157, %165 : vector<2x128xf32>
    %c0_98 = arith.constant 0 : index
    %c3_99 = arith.constant 3 : index
    %c0_100 = arith.constant 0 : index
    %c0_101 = arith.constant 0 : index
    %167 = vector.load %arg5[%c0_98, %c3_99, %c0_100, %c0_101] : memref<1x4x2x128xf32, #tpu.memory_space<vmem>>, vector<1x1x2x128xf32>
    %168 = vector.shape_cast %167 : vector<1x1x2x128xf32> to vector<2x128xf32>
    %169 = vector.shape_cast %166 : vector<2x128xf32> to vector<1x1x2x128xf32>
    tpu.vector_store %arg5[%c0_98, %c3_99, %c0_100, %c0_101], %169 {strides = array<i32>} : memref<1x4x2x128xf32, #tpu.memory_space<vmem>>, vector<1x1x2x128xf32>,
    return
  }
  func.func @transform_0(%arg0: i32, %arg1: i32) -> i32 {
    %c0_i32 = arith.constant 0 : i32
    %c0_i32_0 = arith.constant 0 : i32
    return %c0_i32 : i32
  }
  func.func @transform_1(%arg0: i32, %arg1: i32) -> i32 {
    %c0_i32 = arith.constant 0 : i32
    %c0_i32_0 = arith.constant 0 : i32
    return %c0_i32 : i32
  }
  func.func @transform_2(%arg0: i32, %arg1: i32) -> (i32, i32, i32, i32) {
    %c0_i32 = arith.constant 0 : i32
    %c0_i32_0 = arith.constant 0 : i32
    %c0_i32_1 = arith.constant 0 : i32
    return %arg0, %c0_i32, %arg1, %c0_i32_0 : i32, i32, i32, i32
  }
  func.func @transform_3(%arg0: i32, %arg1: i32) -> (i32, i32, i32, i32) {
    %c0_i32 = arith.constant 0 : i32
    %c0_i32_0 = arith.constant 0 : i32
    %c0_i32_1 = arith.constant 0 : i32
    return %arg0, %c0_i32, %arg1, %c0_i32_0 : i32, i32, i32, i32
  }
}

</mosaic_0001>

<llo_original>
// kernel: tpu_custom_call.1
$region0: #{tpu_custom_call.1}
  #allocation0 [shape = 'u32[]', space=smem, size = 0x4, offset = 0x4, fixed_abs, tag = 'smem constant byte address 0x4 - core index']
  #allocation1 [shape = 'u32[72,128]{1,0:T(1,128)}', space=vmem, size = 0x9000, scoped, tag = 'internal scratch']
  %s0 = inlined_call_operand.hbm [shape: f32[32], index: 0, kind: input, shape index: {}]
  %s1 = inlined_call_operand.hbm [shape: f32[8], index: 1, kind: input, shape index: {}]
  %s2 = inlined_call_operand.hbm [shape: f32[2,4,2,128], index: 2, kind: input, shape index: {}]
  %s3 = inlined_call_operand.hbm [shape: f32[2,4,2,128], index: 3, kind: output, shape index: {}]
  %s4 = sld [smem:[#allocation0]]
  $region57: #{tpu_custom_call.1} parent=0
    _
  %s6 = ssub.s32 1, %s4
  %s7 = scalar_select 0, %s6, %s4
  $region1: #{tpu_custom_call.1} parent=0
    #allocation2 [shape = 'u8[512]{0}', space=smem, size = 0x200, scoped, tag = 'input window, operand 0, single buffered']
    #allocation3 [shape = 's32[2]{0}', space=sflag, size = 0x8, scoped, tag = 'scoped memory for tpu_custom_call.1']
    #allocation4 [shape = 's32[2]{0}', space=sflag, size = 0x8, scoped, tag = 'scoped memory for tpu_custom_call.1']
    #allocation5 [shape = 's32[2]{0}', space=sflag, size = 0x8, scoped, tag = 'scoped memory for tpu_custom_call.1']
    #allocation6 [shape = 'u8[512]{0}', space=smem, size = 0x200, scoped, tag = 'input window, operand 1, single buffered']
    #allocation7 [shape = 's32[1]{0}', space=sflag, size = 0x4, scoped, tag = 'scoped memory for tpu_custom_call.1']
    #allocation8 [shape = 'u8[8192]{0}', space=vmem, size = 0x2000, scoped, tag = 'input window, operand 2']
    #allocation9 [shape = 'u8[8192]{0}', space=vmem, size = 0x2000, scoped, tag = 'output window, operand 0']
    %8 = vsyncpa [#allocation5], 0
    %9 = vsyncpa [#allocation7], 0
    %10 = vsyncpa [#allocation3], 0
    %s11 = scalar_lea.sflag [#allocation3], 1
    %12 = vsyncpa %s11, 0
    %13 = vsyncpa [#allocation4], 0
    %s14 = scalar_lea.sflag [#allocation4], 1
    %15 = vsyncpa %s14, 0
    loop: start=0, step=1, limit=4
    $region2: #{tpu_custom_call.1} parent=1 // loop_pre_header
      _
    $region3: #{tpu_custom_call.1} parent=1 // loop_header
      %s17 = sphi 0, %s21
      %p18 = scmp.ge.s32.totalorder %s17, 4
      %s24 = sphi 0, %s36
      %s25 = sphi 0, %s32
      %s26 = sphi 0, %s24
      %s27 = sphi 0, %s25
      %s28 = sphi 0, %s26
      %s29 = sphi 0, %s27
      %s37 = sphi 0, %s37
      %s39 = sphi 0, %s37
      %s40 = sphi 0, %s39
      %s54 = sphi 0, %s40
      %s58 = sphi 0, %s58
      %s60 = sphi 0, %s58
      %s61 = sphi 0, %s60
      %s75 = sphi 0, %s61
      %s83 = sphi 0, %s85
      %s86 = sphi 0, %s83
      %s87 = sphi 0, %s86
      %s103 = sphi 0, %s87
      %s111 = sphi 0, %s113
      %s114 = sphi 0, %s111
      %s115 = sphi 0, %s114
      %s131 = sphi 0, %s115
    $region4: #{tpu_custom_call.1} parent=1 // loop_header_branch
      %20 = sbr.rel (%p18) target = $region8
    $region5: #{tpu_custom_call.1} parent=1 // loop_body
      %s22 = ssub.s32 %s17, 1
      %s23 = ssub.s32 %s17, 2
      %s30 = sadd.s32 1, %s25
      %p31 = scmp.ge.s32.totalorder %s30, 1
      %s32 = scalar_select %p31, 0, %s30
      %s33 = sadd.s32 1, %s24
      %s34 = scalar_select %p31, %s33, %s24
      %p35 = scmp.ge.s32.totalorder %s34, 2
      %s36 = scalar_select %p35, 0, %s34
      %s38 = sadd.s32 %s37, 1
      %p41 = scmp.eq.s32.totalorder %s17, 1
      %p42 = scmp.ne.s32.totalorder %s37, %s39
      %p43 = scmp.eq.s32.totalorder %s17, 0
      %p44 = por %p42, %p43
      %p45 = scmp.ne.s32.totalorder %s37, %s39
      %p46 = scmp.eq.s32.totalorder %s22, 1
      %p47 = por %p45, %p46
      %p48 = scmp.ne.s32.totalorder %s39, %s40
      %p49 = scmp.eq.s32.totalorder %s22, 0
      %p50 = por %p48, %p49
      %p51 = scmp.ne.s32.totalorder %s39, %s40
      %p52 = scmp.eq.s32.totalorder %s23, 1
      %p53 = por %p51, %p52
      %p55 = scmp.ne.s32.totalorder %s40, %s54
      %p56 = scmp.eq.s32.totalorder %s23, 0
      %p57 = por %p55, %p56
      %s59 = sadd.s32 %s58, 1
      %p62 = scmp.eq.s32.totalorder %s17, 1
      %p63 = scmp.ne.s32.totalorder %s58, %s60
      %p64 = scmp.eq.s32.totalorder %s17, 0
      %p65 = por %p63, %p64
      %p66 = scmp.ne.s32.totalorder %s58, %s60
      %p67 = scmp.eq.s32.totalorder %s22, 1
      %p68 = por %p66, %p67
      %p69 = scmp.ne.s32.totalorder %s60, %s61
      %p70 = scmp.eq.s32.totalorder %s22, 0
      %p71 = por %p69, %p70
      %p72 = scmp.ne.s32.totalorder %s60, %s61
      %p73 = scmp.eq.s32.totalorder %s23, 1
      %p74 = por %p72, %p73
      %p76 = scmp.ne.s32.totalorder %s61, %s75
      %p77 = scmp.eq.s32.totalorder %s23, 0
      %p78 = por %p76, %p77
      %s79 = ssub.s32 %s24, %s36
      %s80 = ssub.s32 %s25, %s32
      %s81 = sor.u32 %s79, %s80
      %p82 = scmp.eq.s32.totalorder %s81, 0
      %s84 = sadd.s32 %s83, 1
      %s85 = scalar_select %p82, %s83, %s84
      %p88 = pneg %p82
      %p89 = scmp.eq.s32.totalorder %s17, 1
      %p90 = por %p88, %p89
      %p91 = scmp.ne.s32.totalorder %s83, %s86
      %p92 = scmp.eq.s32.totalorder %s17, 0
      %p93 = por %p91, %p92
      %p94 = scmp.ne.s32.totalorder %s83, %s86
      %p95 = scmp.eq.s32.totalorder %s22, 1
      %p96 = por %p94, %p95
      %p97 = scmp.ne.s32.totalorder %s86, %s87
      %p98 = scmp.eq.s32.totalorder %s22, 0
      %p99 = por %p97, %p98
      %p100 = scmp.ne.s32.totalorder %s86, %s87
      %p101 = scmp.eq.s32.totalorder %s23, 1
      %p102 = por %p100, %p101
      %p104 = scmp.ne.s32.totalorder %s87, %s103
      %p105 = scmp.eq.s32.totalorder %s23, 0
      %p106 = por %p104, %p105
      %s107 = ssub.s32 %s24, %s36
      %s108 = ssub.s32 %s25, %s32
      %s109 = sor.u32 %s107, %s108
      %p110 = scmp.eq.s32.totalorder %s109, 0
      %s112 = sadd.s32 %s111, 1
      %s113 = scalar_select %p110, %s111, %s112
      %p116 = pneg %p110
      %p117 = scmp.eq.s32.totalorder %s17, 1
      %p118 = por %p116, %p117
      %p119 = scmp.ne.s32.totalorder %s111, %s114
      %p120 = scmp.eq.s32.totalorder %s17, 0
      %p121 = por %p119, %p120
      %p122 = scmp.ne.s32.totalorder %s111, %s114
      %p123 = scmp.eq.s32.totalorder %s22, 1
      %p124 = por %p122, %p123
      %p125 = scmp.ne.s32.totalorder %s114, %s115
      %p126 = scmp.eq.s32.totalorder %s22, 0
      %p127 = por %p125, %p126
      %p128 = scmp.ne.s32.totalorder %s114, %s115
      %p129 = scmp.eq.s32.totalorder %s23, 1
      %p130 = por %p128, %p129
      %p132 = scmp.ne.s32.totalorder %s115, %s131
      %p133 = scmp.eq.s32.totalorder %s23, 0
      %p134 = por %p132, %p133
      %p135 = scmp.le.s32.totalorder 1, %s17
      %p136 = scmp.lt.s32.totalorder %s17, 3
      %p137 = pnand %p135, %p136
      %p138 = pneg %p137
      // Predicated region
      $region9: #{tpu_custom_call.1} parent=5 // pred_check
        _
      $region10: #{tpu_custom_call.1} parent=5 // pred_check_branch
        %140 = sbr.rel (%p137) target = $region12
      $region11: #{tpu_custom_call.1} parent=5 // pred_region
        %s141 = ssub.s32 %s17, 1
        // Predicated region
        $region13: #{tpu_custom_call.1} parent=11 // pred_check
          %p142 = pneg %p50
        $region14: #{tpu_custom_call.1} parent=11 // pred_check_branch
          %144 = sbr.rel (%p142) target = $region16
        $region15: #{tpu_custom_call.1} parent=11 // pred_region
          %146 = vsyncadd [#allocation5], 0
          %s148 = sshll.u32 %s0, 4
          %s149 = int_to_ptr.hbm [resolvable:$true] %s148
          %151 = dma.hbm_to_smem %s149, 16, [#allocation2], [#allocation5]
        $region16: #{tpu_custom_call.1} parent=11 // pred_fallthru
          _
        // Predicated region
        $region17: #{tpu_custom_call.1} parent=11 // pred_check
          %p152 = pneg %p71
        $region18: #{tpu_custom_call.1} parent=11 // pred_check_branch
          %154 = sbr.rel (%p152) target = $region20
        $region19: #{tpu_custom_call.1} parent=11 // pred_region
          %156 = vsyncadd [#allocation7], 0
          %s158 = sshll.u32 %s1, 4
          %s159 = int_to_ptr.hbm [resolvable:$true] %s158
          %161 = dma.hbm_to_smem %s159, 16, [#allocation6], [#allocation7]
        $region20: #{tpu_custom_call.1} parent=11 // pred_fallthru
          _
      $region12: #{tpu_custom_call.1} parent=5 // pred_fallthru
        _
      %p162 = scmp.lt.s32.totalorder %s17, 2
      // Predicated region
      $region21: #{tpu_custom_call.1} parent=5 // pred_check
        %p163 = pneg %p162
      $region22: #{tpu_custom_call.1} parent=5 // pred_check_branch
        %165 = sbr.rel (%p163) target = $region24
      $region23: #{tpu_custom_call.1} parent=5 // pred_region
        // Predicated region
        $region25: #{tpu_custom_call.1} parent=23 // pred_check
          %p166 = pneg %p93
        $region26: #{tpu_custom_call.1} parent=23 // pred_check_branch
          %168 = sbr.rel (%p166) target = $region28
        $region27: #{tpu_custom_call.1} parent=23 // pred_region
          %s169 = sand.u32 %s83, 1
          %s170 = scalar_lea.sflag [#allocation3], %s169
          %s171 = sand.u32 %s83, 1
          %s172 = smul.addr %s171, 8
          %s173 = scalar_lea.vmem [#allocation8], %s172
          %175 = vsyncadd %s170, 0
          %s176 = smul.addr %s24, 4
          %s177 = sadd.s32 %s25, %s176
          %s178 = smul.addr %s177, 2
          %s179 = scalar_lea.hbm %s2, %s178
          %s180 = sshll.u32 %s179, 4
          %s181 = int_to_ptr.hbm [resolvable:$true] %s180
          %s182 = sshll.u32 %s173, 4
          %s183 = int_to_ptr.vmem [resolvable:$true] %s182
          %188 = dma.hbm_to_vmem [thread:$0]  %s181, 128, %s183, %s170, 32, 32, 2
        $region28: #{tpu_custom_call.1} parent=23 // pred_fallthru
          _
      $region24: #{tpu_custom_call.1} parent=5 // pred_fallthru
        _
      %p189 = scmp.le.s32.totalorder 1, %s17
      %p190 = scmp.lt.s32.totalorder %s17, 3
      %p191 = pnand %p189, %p190
      %p192 = pneg %p191
      // Predicated region
      $region29: #{tpu_custom_call.1} parent=5 // pred_check
        _
      $region30: #{tpu_custom_call.1} parent=5 // pred_check_branch
        %194 = sbr.rel (%p191) target = $region32
      $region31: #{tpu_custom_call.1} parent=5 // pred_region
        %s195 = ssub.s32 %s17, 1
        // Predicated region
        $region33: #{tpu_custom_call.1} parent=31 // pred_check
          %p196 = pneg %p50
        $region34: #{tpu_custom_call.1} parent=31 // pred_check_branch
          %198 = sbr.rel (%p196) target = $region36
        $region35: #{tpu_custom_call.1} parent=31 // pred_region
          %200 = dma.done [#allocation5], 16
        $region36: #{tpu_custom_call.1} parent=31 // pred_fallthru
          _
        // Predicated region
        $region37: #{tpu_custom_call.1} parent=31 // pred_check
          %p201 = pneg %p71
        $region38: #{tpu_custom_call.1} parent=31 // pred_check_branch
          %203 = sbr.rel (%p201) target = $region40
        $region39: #{tpu_custom_call.1} parent=31 // pred_region
          %205 = dma.done [#allocation7], 16
        $region40: #{tpu_custom_call.1} parent=31 // pred_fallthru
          _
        %s206 = sand.u32 %s86, 1
        %s207 = scalar_lea.sflag [#allocation3], %s206
        %s208 = sand.u32 %s86, 1
        %s209 = smul.addr %s208, 8
        %s210 = scalar_lea.vmem [#allocation8], %s209
        // Predicated region
        $region41: #{tpu_custom_call.1} parent=31 // pred_check
          %p211 = pneg %p99
        $region42: #{tpu_custom_call.1} parent=31 // pred_check_branch
          %213 = sbr.rel (%p211) target = $region44
        $region43: #{tpu_custom_call.1} parent=31 // pred_region
          %215 = dma.done %s207, 128
        $region44: #{tpu_custom_call.1} parent=31 // pred_fallthru
          _
        %216 = sfence
        %p217 = pneg %p50
        %p218 = pneg %p47
        %p219 = pneg %p71
        %p220 = pneg %p68
        %s221 = sand.u32 %s86, 1
        %s222 = scalar_lea.sflag [#allocation3], %s221
        %s223 = sand.u32 %s86, 1
        %s224 = smul.addr %s223, 8
        %s225 = scalar_lea.vmem [#allocation8], %s224
        %p226 = pneg %p99
        %p227 = pneg %p96
        %p228 = pneg %p127
        %p229 = pneg %p124
        %s230 = sand.u32 %s114, 1
        %s231 = scalar_lea.sflag [#allocation4], %s230
        %s232 = sand.u32 %s114, 1
        %s233 = smul.addr %s232, 8
        %s234 = scalar_lea.vmem [#allocation9], %s233
        %s235 = smul.u32 %s26, 16
        %s236 = smul.u32 %s26, 4
        %v237 = vld [vmem:[%s210] sm:$0x3]
        %s238 = sld [smem:[#allocation2 + %s235]]
        %v239 = vstv %s238
        %v240 = vmul.f32 %v237, %v239
        %s241 = sld [smem:[#allocation6 + %s236]]
        %v242 = vstv %s241
        %v243 = vadd.f32 %v240, %v242
        %s244 = scalar_lea.vmem %s210, 2 [#allocation8]
        %v245 = vld [vmem:[%s244] sm:$0x3]
        %s246 = sadd.s32 %s235, 1
        %s247 = sld [smem:[#allocation2 + %s246]]
        %v248 = vstv %s247
        %v249 = vmul.f32 %v245, %v248
        %v250 = vadd.f32 %v243, %v249
        %s251 = scalar_lea.vmem %s210, 4 [#allocation8]
        %v252 = vld [vmem:[%s251] sm:$0x3]
        %s253 = sadd.s32 %s235, 2
        %s254 = sld [smem:[#allocation2 + %s253]]
        %v255 = vstv %s254
        %v256 = vmul.f32 %v252, %v255
        %v257 = vadd.f32 %v250, %v256
        %s258 = scalar_lea.vmem %s210, 6 [#allocation8]
        %v259 = vld [vmem:[%s258] sm:$0x3]
        %s260 = sadd.s32 %s235, 3
        %s261 = sld [smem:[#allocation2 + %s260]]
        %v262 = vstv %s261
        %v263 = vmul.f32 %v259, %v262
        %v264 = vadd.f32 %v257, %v263
        %265 = vst [vmem:[%s234] sm:$0x3] %v264
        %v266 = vld [vmem:[%s210] sm:$0x3]
        %s267 = sadd.s32 %s235, 4
        %s268 = sld [smem:[#allocation2 + %s267]]
        %v269 = vstv %s268
        %v270 = vmul.f32 %v266, %v269
        %s271 = sadd.s32 %s236, 1
        %s272 = sld [smem:[#allocation6 + %s271]]
        %v273 = vstv %s272
        %v274 = vadd.f32 %v270, %v273
        %v275 = vld [vmem:[%s244] sm:$0x3]
        %s276 = sadd.s32 %s235, 5
        %s277 = sld [smem:[#allocation2 + %s276]]
        %v278 = vstv %s277
        %v279 = vmul.f32 %v275, %v278
        %v280 = vadd.f32 %v274, %v279
        %v281 = vld [vmem:[%s251] sm:$0x3]
        %s282 = sadd.s32 %s235, 6
        %s283 = sld [smem:[#allocation2 + %s282]]
        %v284 = vstv %s283
        %v285 = vmul.f32 %v281, %v284
        %v286 = vadd.f32 %v280, %v285
        %v287 = vld [vmem:[%s258] sm:$0x3]
        %s288 = sadd.s32 %s235, 7
        %s289 = sld [smem:[#allocation2 + %s288]]
        %v290 = vstv %s289
        %v291 = vmul.f32 %v287, %v290
        %v292 = vadd.f32 %v286, %v291
        %s293 = scalar_lea.vmem %s234, 2 [#allocation9]
        %294 = vst [vmem:[%s293] sm:$0x3] %v292
        %v295 = vld [vmem:[%s210] sm:$0x3]
        %s296 = sadd.s32 %s235, 8
        %s297 = sld [smem:[#allocation2 + %s296]]
        %v298 = vstv %s297
        %v299 = vmul.f32 %v295, %v298
        %s300 = sadd.s32 %s236, 2
        %s301 = sld [smem:[#allocation6 + %s300]]
        %v302 = vstv %s301
        %v303 = vadd.f32 %v299, %v302
        %v304 = vld [vmem:[%s244] sm:$0x3]
        %s305 = sadd.s32 %s235, 9
        %s306 = sld [smem:[#allocation2 + %s305]]
        %v307 = vstv %s306
        %v308 = vmul.f32 %v304, %v307
        %v309 = vadd.f32 %v303, %v308
        %v310 = vld [vmem:[%s251] sm:$0x3]
        %s311 = sadd.s32 %s235, 10
        %s312 = sld [smem:[#allocation2 + %s311]]
        %v313 = vstv %s312
        %v314 = vmul.f32 %v310, %v313
        %v315 = vadd.f32 %v309, %v314
        %v316 = vld [vmem:[%s258] sm:$0x3]
        %s317 = sadd.s32 %s235, 11
        %s318 = sld [smem:[#allocation2 + %s317]]
        %v319 = vstv %s318
        %v320 = vmul.f32 %v316, %v319
        %v321 = vadd.f32 %v315, %v320
        %s322 = scalar_lea.vmem %s234, 4 [#allocation9]
        %323 = vst [vmem:[%s322] sm:$0x3] %v321
        %v324 = vld [vmem:[%s210] sm:$0x3]
        %s325 = sadd.s32 %s235, 12
        %s326 = sld [smem:[#allocation2 + %s325]]
        %v327 = vstv %s326
        %v328 = vmul.f32 %v324, %v327
        %s329 = sadd.s32 %s236, 3
        %s330 = sld [smem:[#allocation6 + %s329]]
        %v331 = vstv %s330
        %v332 = vadd.f32 %v328, %v331
        %v333 = vld [vmem:[%s244] sm:$0x3]
        %s334 = sadd.s32 %s235, 13
        %s335 = sld [smem:[#allocation2 + %s334]]
        %v336 = vstv %s335
        %v337 = vmul.f32 %v333, %v336
        %v338 = vadd.f32 %v332, %v337
        %v339 = vld [vmem:[%s251] sm:$0x3]
        %s340 = sadd.s32 %s235, 14
        %s341 = sld [smem:[#allocation2 + %s340]]
        %v342 = vstv %s341
        %v343 = vmul.f32 %v339, %v342
        %v344 = vadd.f32 %v338, %v343
        %v345 = vld [vmem:[%s258] sm:$0x3]
        %s346 = sadd.s32 %s235, 15
        %s347 = sld [smem:[#allocation2 + %s346]]
        %v348 = vstv %s347
        %v349 = vmul.f32 %v345, %v348
        %v350 = vadd.f32 %v344, %v349
        %s351 = scalar_lea.vmem %s234, 6 [#allocation9]
        %352 = vst [vmem:[%s351] sm:$0x3] %v350
        %s353 = sand.u32 %s114, 1
        %s354 = scalar_lea.sflag [#allocation4], %s353
        %s355 = sand.u32 %s114, 1
        %s356 = smul.addr %s355, 8
        %s357 = scalar_lea.vmem [#allocation9], %s356
        // Predicated region
        $region45: #{tpu_custom_call.1} parent=31 // pred_check
          %p358 = pneg %p124
        $region46: #{tpu_custom_call.1} parent=31 // pred_check_branch
          %360 = sbr.rel (%p358) target = $region48
        $region47: #{tpu_custom_call.1} parent=31 // pred_region
          %362 = vsyncadd %s354, 0
          %s363 = smul.addr %s26, 4
          %s364 = sadd.s32 %s27, %s363
          %s365 = smul.addr %s364, 2
          %s366 = scalar_lea.hbm %s3, %s365
          %s367 = sshll.u32 %s357, 4
          %s368 = int_to_ptr.vmem [resolvable:$true] %s367
          %s369 = sshll.u32 %s366, 4
          %s370 = int_to_ptr.hbm [resolvable:$true] %s369
          %375 = dma.vmem_to_hbm [thread:$0]  %s368, 128, %s370, %s354, 32, 32, 2
        $region48: #{tpu_custom_call.1} parent=31 // pred_fallthru
          _
      $region32: #{tpu_custom_call.1} parent=5 // pred_fallthru
        _
      %p376 = scmp.le.s32.totalorder 2, %s17
      // Predicated region
      $region49: #{tpu_custom_call.1} parent=5 // pred_check
        %p377 = pneg %p376
      $region50: #{tpu_custom_call.1} parent=5 // pred_check_branch
        %379 = sbr.rel (%p377) target = $region52
      $region51: #{tpu_custom_call.1} parent=5 // pred_region
        %s380 = ssub.s32 %s17, 2
        // Predicated region
        $region53: #{tpu_custom_call.1} parent=51 // pred_check
          %p381 = pneg %p130
        $region54: #{tpu_custom_call.1} parent=51 // pred_check_branch
          %383 = sbr.rel (%p381) target = $region56
        $region55: #{tpu_custom_call.1} parent=51 // pred_region
          %s384 = sand.u32 %s115, 1
          %s385 = scalar_lea.sflag [#allocation4], %s384
          %s386 = sand.u32 %s115, 1
          %s387 = smul.addr %s386, 8
          %s388 = scalar_lea.vmem [#allocation9], %s387
          %390 = dma.done %s385, 128
        $region56: #{tpu_custom_call.1} parent=51 // pred_fallthru
          _
      $region52: #{tpu_custom_call.1} parent=5 // pred_fallthru
        _
    $region6: #{tpu_custom_call.1} parent=1 // loop_footer
      %s21 = sadd.s32 1, %s17
    $region7: #{tpu_custom_call.1} parent=1 // loop_footer_branch
      %16 = sbr.rel target = $region3
    $region8: #{tpu_custom_call.1} parent=1 // loop_exit
      _
    %391 = vsyncpa [#allocation3], 1
    %s392 = scalar_lea.sflag [#allocation3], 1
    %393 = vsyncpa %s392, 1
    %394 = vsyncpa [#allocation4], 1
    %s395 = scalar_lea.sflag [#allocation4], 1
    %396 = vsyncpa %s395, 1
    %397 = vsyncpa [#allocation5], 1
    %s398 = scalar_lea.sflag [#allocation5], 1
    %399 = vsyncpa %s398, 1
    %400 = vsyncpa [#allocation7], 1

</llo_original>
